<compile_context>
chip_gen: v7x
topology: tpu7x:2x2x1
jax: 0.10.0
libtpu: 0.0.40
codegen_flags: <defaults>
</compile_context>

<pallas_src>
import functools
import math

import jax
import jax.numpy as jnp
from jax.experimental import pallas as pl
from jax.experimental.pallas import tpu as pltpu

LANE = 128  # v5e MXU width; use 256 on v6e/v7x if n_hid ever becomes non-toy.


def _round_up(x, m):
    return ((x + m - 1) // m) * m


def _leaky_relu(x, negative_slope=0.01):
    # nn.LeakyReLU default negative_slope = 0.01
    return jnp.where(x >= 0, x, negative_slope * x)


def linear_2l_kernel(x_ref,
                     w1_ref, b1_ref,
                     w2_ref, b2_ref,
                     w3_ref, b3_ref,
                     w4_ref, b4_ref,
                     y_ref):
    """One batch-tile of the fused MLP. Weights/biases are VMEM-resident."""
    x = x_ref[...]  # bf16 (tile_b, D0)

    # matmuls in bf16 with f32 accumulation; elementwise (bias, LeakyReLU) in f32.
    h = jnp.dot(x, w1_ref[...], preferred_element_type=jnp.float32) + b1_ref[...]
    h = _leaky_relu(h)

    h = jnp.dot(h.astype(jnp.bfloat16), w2_ref[...],
                preferred_element_type=jnp.float32) + b2_ref[...]
    h = _leaky_relu(h)

    h = jnp.dot(h.astype(jnp.bfloat16), w3_ref[...],
                preferred_element_type=jnp.float32) + b3_ref[...]
    h = _leaky_relu(h)

    y = jnp.dot(h.astype(jnp.bfloat16), w4_ref[...],
                preferred_element_type=jnp.float32) + b4_ref[...]
    y_ref[...] = y.astype(y_ref.dtype)  # bf16 store off the f32 accumulator


def layer_dims(in_channels, out_channels, input_size, n_hid):
    input_dim = in_channels * input_size * input_size
    return [
        (input_dim, int(n_hid * 1.5)),     # fc1
        (int(n_hid * 1.5), n_hid),         # fc2
        (n_hid, int(n_hid * 0.5)),         # fc3
        (int(n_hid * 0.5), out_channels),  # fc4
    ]


def init_params(key, in_channels, out_channels, input_size, n_hid, lane=LANE):
    """nn.Linear-style U(-1/sqrt(fan_in), +) init, stored as (in, out),
    zero-padded to `lane` multiples. Weights bf16, biases f32.  Zero padding is
    exact: padded columns produce 0 activations and LeakyReLU(0) = 0."""
    params = []
    for (fan_in, fan_out) in layer_dims(in_channels, out_channels, input_size, n_hid):
        key, kw, kb = jax.random.split(key, 3)
        bound = 1.0 / math.sqrt(fan_in)
        w = jax.random.uniform(kw, (fan_in, fan_out), jnp.float32, -bound, bound)
        b = jax.random.uniform(kb, (fan_out,), jnp.float32, -bound, bound)
        fi_p = _round_up(fan_in, lane)
        fo_p = _round_up(fan_out, lane)
        w_p = jnp.zeros((fi_p, fo_p), jnp.bfloat16)
        w_p = w_p.at[:fan_in, :fan_out].set(w.astype(jnp.bfloat16))
        b_p = jnp.zeros((1, fo_p), jnp.float32).at[0, :fan_out].set(b)
        params.append((w_p, b_p))
    return params


def _resident_spec(arr):
    """Weights/biases: constant index map -> DMA'd once, VMEM-resident across
    batch tiles.  Single-buffered when supported (no re-DMA after step 0, so a
    second buffer only wastes VMEM — matters on v7x's 64 MiB once dims grow)."""
    idx = lambda i: (0, 0)
    try:
        return pl.BlockSpec(arr.shape, idx, pipeline_mode=pl.Buffered(1))
    except Exception:  # older jax without pipeline_mode / Buffered(1)
        return pl.BlockSpec(arr.shape, idx)


@functools.partial(jax.jit, static_argnames=("input_dim", "out_channels", "tile_b"))
def linear_2l_forward(x, params, *, input_dim, out_channels, tile_b=512):
    (w1, b1), (w2, b2), (w3, b3), (w4, b4) = params
    D0 = w1.shape[0]   # padded input width (multiple of 128)
    D4 = w4.shape[1]   # padded output width (multiple of 128)

    # x.view(-1, input_dim) equivalent
    x_flat = x.reshape(-1, input_dim)
    B = x_flat.shape[0]

    # ---- batch-tile selection -------------------------------------------
    # Multiple of 16 (bf16 sublane packing), as large as tile_b allows, but kept
    # inside a VMEM budget (v7x: 64 MiB physical / 32 MiB scoped default).
    weight_bytes = sum(int(w.size) * w.dtype.itemsize +
                       int(b.size) * b.dtype.itemsize for w, b in params)
    bytes_per_row = 2 * (D0 + D4) * 2          # double-buffered bf16 x + y per row
    tile_budget = max(16 * bytes_per_row, (24 << 20) - 2 * weight_bytes)
    max_tb = max(16, (tile_budget // bytes_per_row) // 16 * 16)
    # TODO(synk): for very large input_dim, split fc1 over K (second "arbitrary"
    # grid axis + f32 accumulator scratch) instead of shrinking the batch tile.

    B16 = _round_up(B, 16)
    tb = min(_round_up(tile_b, 16), B16, max_tb)
    if tb >= B16 >= 32:
        # >= 2 grid steps so v7x's second TensorCore gets a share of the batch.
        tb = _round_up(B16 // 2, 16)
    B_pad = _round_up(B, tb)
    grid = (B_pad // tb,)

    # ---- input: f32->bf16 cast fused with a (mostly batch-only) pad, one pass.
    x_bf = x_flat.astype(jnp.bfloat16)
    if B_pad != B or D0 != input_dim:
        x_bf = jnp.pad(x_bf, ((0, B_pad - B), (0, D0 - input_dim)))

    # ---- VMEM limit derived from actual buffer sizes (headroom for scratch).
    vmem_needed = 2 * tb * (D0 + D4) * 2 + 2 * weight_bytes
    vmem_limit = int(min(max(2 * vmem_needed + (2 << 20), 16 << 20), 64 << 20))

    # Scheduling hint for XLA around the custom call.
    flops = 2 * B_pad * sum(int(w.shape[0]) * int(w.shape[1]) for w, _ in params)
    bytes_accessed = B_pad * D0 * 2 + weight_bytes + B_pad * D4 * 2
    cost = pl.CostEstimate(flops=flops, transcendentals=0,
                           bytes_accessed=bytes_accessed)

    y_pad = pl.pallas_call(
        linear_2l_kernel,
        out_shape=jax.ShapeDtypeStruct((B_pad, D4), jnp.bfloat16),
        grid=grid,
        in_specs=[
            pl.BlockSpec((tb, D0), lambda i: (i, 0)),       # x batch tile
            _resident_spec(w1), _resident_spec(b1),
            _resident_spec(w2), _resident_spec(b2),
            _resident_spec(w3), _resident_spec(b3),
            _resident_spec(w4), _resident_spec(b4),
        ],
        out_specs=pl.BlockSpec((tb, D4), lambda i: (i, 0)),  # lane-dense output
        compiler_params=pltpu.CompilerParams(
            dimension_semantics=("parallel",),                # megacore on v7x
            vmem_limit_bytes=vmem_limit,
        ),
        cost_estimate=cost,
    )(x_bf, w1, b1, w2, b2, w3, b3, w4, b4)

    # Strip batch and lane padding (padded rows only ever feed this slice).
    return y_pad[:B, :out_channels].astype(jnp.float32)


def reference_forward(x, params, input_dim, out_channels):
    """Plain-JAX reference using the same padded bf16 params."""
    h = x.reshape(-1, input_dim).astype(jnp.bfloat16)
    D0 = params[0][0].shape[0]
    h = jnp.pad(h, ((0, 0), (0, D0 - input_dim)))
    for i, (w, b) in enumerate(params):
        h = jnp.dot(h, w, preferred_element_type=jnp.float32) + b
        if i < 3:
            h = _leaky_relu(h).astype(jnp.bfloat16)
    return h[:, :out_channels]


# TODO(synk): feature_list / intermediate_forward / penultimate_forward are just
# truncated versions of the same forward; only the full forward() is kernelized.

if __name__ == "__main__":
    # Small shapes consistent with the module: batch=2, channels=4, spatial=16,
    # n_hid=32, out_channels=10  ->  input_dim = 4*16*16 = 1024.
    B, C, H, n_hid, out_channels = 2, 4, 16, 32, 10
    input_dim = C * H * H

    key = jax.random.PRNGKey(0)
    key_x, key_p = jax.random.split(key)
    x = jax.random.normal(key_x, (B, C, H, H), dtype=jnp.float32)
    params = init_params(key_p, C, out_channels, H, n_hid)

    y = linear_2l_forward(x, params, input_dim=input_dim,
                          out_channels=out_channels)
    y = jax.block_until_ready(y)

    y_ref = reference_forward(x, params, input_dim, out_channels)
    assert y.shape == (B, out_channels), y.shape
    assert jnp.allclose(y, y_ref, atol=2e-2, rtol=2e-2), "mismatch vs reference"

    print("KERNEL_OK")
</pallas_src>

<mosaic_0001>
module attributes {stable_mosaic.version = 11 : i64} {
  func.func @linear_2l_kernel(%arg0: i32, %arg1: memref<16x1024xbf16, #tpu.memory_space<vmem>>, %arg2: memref<1024x128xbf16, #tpu.memory_space<vmem>>, %arg3: memref<1x128xf32, #tpu.memory_space<vmem>>, %arg4: memref<128x128xbf16, #tpu.memory_space<vmem>>, %arg5: memref<1x128xf32, #tpu.memory_space<vmem>>, %arg6: memref<128x128xbf16, #tpu.memory_space<vmem>>, %arg7: memref<1x128xf32, #tpu.memory_space<vmem>>, %arg8: memref<128x128xbf16, #tpu.memory_space<vmem>>, %arg9: memref<1x128xf32, #tpu.memory_space<vmem>>, %arg10: memref<16x128xbf16, #tpu.memory_space<vmem>>) attributes {dimension_semantics = [#tpu.dimension_semantics<parallel>], iteration_bounds = array<i64: 1>, scalar_prefetch = 0 : i64, scratch_operands = 0 : i64, tpu.core_type = #tpu.core_type<tc>, window_params = [{transform_indices = @transform_0, window_bounds = array<i64: 16, 1024>}, {pipeline_mode = #tpu.pipeline_mode<synchronous>, transform_indices = @transform_1, window_bounds = array<i64: 1024, 128>}, {pipeline_mode = #tpu.pipeline_mode<synchronous>, transform_indices = @transform_2, window_bounds = array<i64: 1, 128>}, {pipeline_mode = #tpu.pipeline_mode<synchronous>, transform_indices = @transform_3, window_bounds = array<i64: 128, 128>}, {pipeline_mode = #tpu.pipeline_mode<synchronous>, transform_indices = @transform_4, window_bounds = array<i64: 1, 128>}, {pipeline_mode = #tpu.pipeline_mode<synchronous>, transform_indices = @transform_5, window_bounds = array<i64: 128, 128>}, {pipeline_mode = #tpu.pipeline_mode<synchronous>, transform_indices = @transform_6, window_bounds = array<i64: 1, 128>}, {pipeline_mode = #tpu.pipeline_mode<synchronous>, transform_indices = @transform_7, window_bounds = array<i64: 128, 128>}, {pipeline_mode = #tpu.pipeline_mode<synchronous>, transform_indices = @transform_8, window_bounds = array<i64: 1, 128>}, {transform_indices = @transform_9, window_bounds = array<i64: 16, 128>}]} {
    %c0 = arith.constant 0 : index
    %c0_0 = arith.constant 0 : index
    %0 = vector.load %arg1[%c0, %c0_0] : memref<16x1024xbf16, #tpu.memory_space<vmem>>, vector<16x1024xbf16>
    %c0_1 = arith.constant 0 : index
    %c0_2 = arith.constant 0 : index
    %1 = vector.load %arg2[%c0_1, %c0_2] : memref<1024x128xbf16, #tpu.memory_space<vmem>>, vector<1024x128xbf16>
    %cst = arith.constant dense<0.000000e+00> : vector<16x128xf32>
    %2 = tpu.matmul %0, %1, %cst {dimension_numbers = #tpu.dot_dimension_numbers<[1], [0], [0], [1], [0, 0, 1, 1], [], []>} : vector<16x1024xbf16>, vector<1024x128xbf16>, vector<16x128xf32> -> vector<16x128xf32>
    %c0_3 = arith.constant 0 : index
    %c0_4 = arith.constant 0 : index
    %3 = vector.load %arg3[%c0_3, %c0_4] : memref<1x128xf32, #tpu.memory_space<vmem>>, vector<1x128xf32>
    %4 = vector.broadcast %3 : vector<1x128xf32> to vector<16x128xf32>
    %5 = arith.addf %2, %4 : vector<16x128xf32>
    %cst_5 = arith.constant 0.000000e+00 : f32
    %6 = vector.broadcast %cst_5 : f32 to vector<16x128xf32>
    %7 = arith.cmpf oge, %5, %6 : vector<16x128xf32>
    %cst_6 = arith.constant 0.00999999977 : f32
    %8 = vector.broadcast %cst_6 : f32 to vector<16x128xf32>
    %9 = arith.mulf %8, %5 : vector<16x128xf32>
    %10 = arith.select %7, %5, %9 : vector<16x128xi1>, vector<16x128xf32>
    %11 = arith.truncf %10 : vector<16x128xf32> to vector<16x128xbf16>
    %c0_7 = arith.constant 0 : index
    %c0_8 = arith.constant 0 : index
    %12 = vector.load %arg4[%c0_7, %c0_8] : memref<128x128xbf16, #tpu.memory_space<vmem>>, vector<128x128xbf16>
    %cst_9 = arith.constant dense<0.000000e+00> : vector<16x128xf32>
    %13 = tpu.matmul %11, %12, %cst_9 {dimension_numbers = #tpu.dot_dimension_numbers<[1], [0], [0], [1], [0, 0, 1, 1], [], []>} : vector<16x128xbf16>, vector<128x128xbf16>, vector<16x128xf32> -> vector<16x128xf32>
    %c0_10 = arith.constant 0 : index
    %c0_11 = arith.constant 0 : index
    %14 = vector.load %arg5[%c0_10, %c0_11] : memref<1x128xf32, #tpu.memory_space<vmem>>, vector<1x128xf32>
    %15 = vector.broadcast %14 : vector<1x128xf32> to vector<16x128xf32>
    %16 = arith.addf %13, %15 : vector<16x128xf32>
    %cst_12 = arith.constant 0.000000e+00 : f32
    %17 = vector.broadcast %cst_12 : f32 to vector<16x128xf32>
    %18 = arith.cmpf oge, %16, %17 : vector<16x128xf32>
    %cst_13 = arith.constant 0.00999999977 : f32
    %19 = vector.broadcast %cst_13 : f32 to vector<16x128xf32>
    %20 = arith.mulf %19, %16 : vector<16x128xf32>
    %21 = arith.select %18, %16, %20 : vector<16x128xi1>, vector<16x128xf32>
    %22 = arith.truncf %21 : vector<16x128xf32> to vector<16x128xbf16>
    %c0_14 = arith.constant 0 : index
    %c0_15 = arith.constant 0 : index
    %23 = vector.load %arg6[%c0_14, %c0_15] : memref<128x128xbf16, #tpu.memory_space<vmem>>, vector<128x128xbf16>
    %cst_16 = arith.constant dense<0.000000e+00> : vector<16x128xf32>
    %24 = tpu.matmul %22, %23, %cst_16 {dimension_numbers = #tpu.dot_dimension_numbers<[1], [0], [0], [1], [0, 0, 1, 1], [], []>} : vector<16x128xbf16>, vector<128x128xbf16>, vector<16x128xf32> -> vector<16x128xf32>
    %c0_17 = arith.constant 0 : index
    %c0_18 = arith.constant 0 : index
    %25 = vector.load %arg7[%c0_17, %c0_18] : memref<1x128xf32, #tpu.memory_space<vmem>>, vector<1x128xf32>
    %26 = vector.broadcast %25 : vector<1x128xf32> to vector<16x128xf32>
    %27 = arith.addf %24, %26 : vector<16x128xf32>
    %cst_19 = arith.constant 0.000000e+00 : f32
    %28 = vector.broadcast %cst_19 : f32 to vector<16x128xf32>
    %29 = arith.cmpf oge, %27, %28 : vector<16x128xf32>
    %cst_20 = arith.constant 0.00999999977 : f32
    %30 = vector.broadcast %cst_20 : f32 to vector<16x128xf32>
    %31 = arith.mulf %30, %27 : vector<16x128xf32>
    %32 = arith.select %29, %27, %31 : vector<16x128xi1>, vector<16x128xf32>
    %33 = arith.truncf %32 : vector<16x128xf32> to vector<16x128xbf16>
    %c0_21 = arith.constant 0 : index
    %c0_22 = arith.constant 0 : index
    %34 = vector.load %arg8[%c0_21, %c0_22] : memref<128x128xbf16, #tpu.memory_space<vmem>>, vector<128x128xbf16>
    %cst_23 = arith.constant dense<0.000000e+00> : vector<16x128xf32>
    %35 = tpu.matmul %33, %34, %cst_23 {dimension_numbers = #tpu.dot_dimension_numbers<[1], [0], [0], [1], [0, 0, 1, 1], [], []>} : vector<16x128xbf16>, vector<128x128xbf16>, vector<16x128xf32> -> vector<16x128xf32>
    %c0_24 = arith.constant 0 : index
    %c0_25 = arith.constant 0 : index
    %36 = vector.load %arg9[%c0_24, %c0_25] : memref<1x128xf32, #tpu.memory_space<vmem>>, vector<1x128xf32>
    %37 = vector.broadcast %36 : vector<1x128xf32> to vector<16x128xf32>
    %38 = arith.addf %35, %37 : vector<16x128xf32>
    %39 = arith.truncf %38 : vector<16x128xf32> to vector<16x128xbf16>
    %c0_26 = arith.constant 0 : index
    %c0_27 = arith.constant 0 : index
    %40 = vector.load %arg10[%c0_26, %c0_27] : memref<16x128xbf16, #tpu.memory_space<vmem>>, vector<16x128xbf16>
    tpu.vector_store %arg10[%c0_26, %c0_27], %39 {strides = array<i32>} : memref<16x128xbf16, #tpu.memory_space<vmem>>, vector<16x128xbf16>,
    return
  }
  func.func @transform_0(%arg0: i32) -> (i32, i32) {
    %c0_i32 = arith.constant 0 : i32
    %c0_i32_0 = arith.constant 0 : i32
    return %arg0, %c0_i32 : i32, i32
  }
  func.func @transform_1(%arg0: i32) -> (i32, i32) {
    %c0_i32 = arith.constant 0 : i32
    %c0_i32_0 = arith.constant 0 : i32
    %c0_i32_1 = arith.constant 0 : i32
    return %c0_i32, %c0_i32_0 : i32, i32
  }
  func.func @transform_2(%arg0: i32) -> (i32, i32) {
    %c0_i32 = arith.constant 0 : i32
    %c0_i32_0 = arith.constant 0 : i32
    %c0_i32_1 = arith.constant 0 : i32
    return %c0_i32, %c0_i32_0 : i32, i32
  }
  func.func @transform_3(%arg0: i32) -> (i32, i32) {
    %c0_i32 = arith.constant 0 : i32
    %c0_i32_0 = arith.constant 0 : i32
    %c0_i32_1 = arith.constant 0 : i32
    return %c0_i32, %c0_i32_0 : i32, i32
  }
  func.func @transform_4(%arg0: i32) -> (i32, i32) {
    %c0_i32 = arith.constant 0 : i32
    %c0_i32_0 = arith.constant 0 : i32
    %c0_i32_1 = arith.constant 0 : i32
    return %c0_i32, %c0_i32_0 : i32, i32
  }
  func.func @transform_5(%arg0: i32) -> (i32, i32) {
    %c0_i32 = arith.constant 0 : i32
    %c0_i32_0 = arith.constant 0 : i32
    %c0_i32_1 = arith.constant 0 : i32
    return %c0_i32, %c0_i32_0 : i32, i32
  }
  func.func @transform_6(%arg0: i32) -> (i32, i32) {
    %c0_i32 = arith.constant 0 : i32
    %c0_i32_0 = arith.constant 0 : i32
    %c0_i32_1 = arith.constant 0 : i32
    return %c0_i32, %c0_i32_0 : i32, i32
  }
  func.func @transform_7(%arg0: i32) -> (i32, i32) {
    %c0_i32 = arith.constant 0 : i32
    %c0_i32_0 = arith.constant 0 : i32
    %c0_i32_1 = arith.constant 0 : i32
    return %c0_i32, %c0_i32_0 : i32, i32
  }
  func.func @transform_8(%arg0: i32) -> (i32, i32) {
    %c0_i32 = arith.constant 0 : i32
    %c0_i32_0 = arith.constant 0 : i32
    %c0_i32_1 = arith.constant 0 : i32
    return %c0_i32, %c0_i32_0 : i32, i32
  }
  func.func @transform_9(%arg0: i32) -> (i32, i32) {
    %c0_i32 = arith.constant 0 : i32
    %c0_i32_0 = arith.constant 0 : i32
    return %arg0, %c0_i32 : i32, i32
  }
}

</mosaic_0001>

<llo_original>
// kernel: linear_2l_forward.1
$region0: #{linear_2l_forward.1}
  #allocation0 [shape = 'u32[]', space=smem, size = 0x4, offset = 0x4, fixed_abs, tag = 'smem constant byte address 0x4 - core index']
  #allocation1 [shape = 'u32[144,128]{1,0:T(1,128)}', space=vmem, size = 0x12000, scoped, tag = 'internal scratch']
  %s0 = inlined_call_operand.vmem [shape: bf16[16,1024], index: 0, kind: input, shape index: {}]
  %s1 = inlined_call_operand.hbm [shape: bf16[1024,128], index: 1, kind: input, shape index: {}]
  %s2 = inlined_call_operand.vmem [shape: f32[1,128], index: 2, kind: input, shape index: {}]
  %s3 = inlined_call_operand.vmem [shape: bf16[128,128], index: 3, kind: input, shape index: {}]
  %s4 = inlined_call_operand.vmem [shape: f32[1,128], index: 4, kind: input, shape index: {}]
  %s5 = inlined_call_operand.vmem [shape: bf16[128,128], index: 5, kind: input, shape index: {}]
  %s6 = inlined_call_operand.vmem [shape: f32[1,128], index: 6, kind: input, shape index: {}]
  %s7 = inlined_call_operand.vmem [shape: bf16[128,128], index: 7, kind: input, shape index: {}]
  %s8 = inlined_call_operand.vmem [shape: f32[1,128], index: 8, kind: input, shape index: {}]
  %s9 = inlined_call_operand.vmem [shape: bf16[16,128], index: 9, kind: output, shape index: {}]
  %s10 = sld [smem:[#allocation0]]
  $region50: #{linear_2l_forward.1} parent=0
    _
  %s12 = ssub.s32 1, %s10
  %s13 = scalar_select 0, %s12, %s10
  $region1: #{linear_2l_forward.1} parent=0
    #allocation2 [shape = 'u8[262144]{0}', space=vmem, size = 0x40000, scoped, tag = 'input window, operand 1, single buffered']
    #allocation3 [shape = 's32[1]{0}', space=sflag, size = 0x4, scoped, tag = 'scoped memory for linear_2l_forward.1']
    %14 = vsyncpa [#allocation3], 0
    // Predicated region
    $region2: #{linear_2l_forward.1} parent=1 // pred_check
      _
    $region3: #{linear_2l_forward.1} parent=1 // pred_check_branch
      %16 = sbr.rel (0) target = $region5
    $region4: #{linear_2l_forward.1} parent=1 // pred_region
      _
    $region5: #{linear_2l_forward.1} parent=1 // pred_fallthru
      _
    // Predicated region
    $region6: #{linear_2l_forward.1} parent=1 // pred_check
      _
    $region7: #{linear_2l_forward.1} parent=1 // pred_check_branch
      %18 = sbr.rel (0) target = $region9
    $region8: #{linear_2l_forward.1} parent=1 // pred_region
      %s20 = ssub.s32 8192, 8192
      %21 = vsyncadd [#allocation3], %s20
      %s22 = sshll.u32 [#allocation2], 4
      %s23 = int_to_ptr.vmem [resolvable:$true] %s22
      %28 = dma.hbm_to_vmem [thread:$0]  %s1, 8192, %s23, [#allocation3], 64, 64, 4
    $region9: #{linear_2l_forward.1} parent=1 // pred_fallthru
      _
    // Predicated region
    $region10: #{linear_2l_forward.1} parent=1 // pred_check
      _
    $region11: #{linear_2l_forward.1} parent=1 // pred_check_branch
      %30 = sbr.rel (0) target = $region13
    $region12: #{linear_2l_forward.1} parent=1 // pred_region
      _
    $region13: #{linear_2l_forward.1} parent=1 // pred_fallthru
      _
    // Predicated region
    $region14: #{linear_2l_forward.1} parent=1 // pred_check
      _
    $region15: #{linear_2l_forward.1} parent=1 // pred_check_branch
      %32 = sbr.rel (0) target = $region17
    $region16: #{linear_2l_forward.1} parent=1 // pred_region
      _
    $region17: #{linear_2l_forward.1} parent=1 // pred_fallthru
      _
    // Predicated region
    $region18: #{linear_2l_forward.1} parent=1 // pred_check
      _
    $region19: #{linear_2l_forward.1} parent=1 // pred_check_branch
      %34 = sbr.rel (0) target = $region21
    $region20: #{linear_2l_forward.1} parent=1 // pred_region
      _
    $region21: #{linear_2l_forward.1} parent=1 // pred_fallthru
      _
    // Predicated region
    $region22: #{linear_2l_forward.1} parent=1 // pred_check
      _
    $region23: #{linear_2l_forward.1} parent=1 // pred_check_branch
      %36 = sbr.rel (0) target = $region25
    $region24: #{linear_2l_forward.1} parent=1 // pred_region
      _
    $region25: #{linear_2l_forward.1} parent=1 // pred_fallthru
      _
    // Predicated region
    $region26: #{linear_2l_forward.1} parent=1 // pred_check
      _
    $region27: #{linear_2l_forward.1} parent=1 // pred_check_branch
      %38 = sbr.rel (0) target = $region29
    $region28: #{linear_2l_forward.1} parent=1 // pred_region
      _
    $region29: #{linear_2l_forward.1} parent=1 // pred_fallthru
      _
    // Predicated region
    $region30: #{linear_2l_forward.1} parent=1 // pred_check
      _
    $region31: #{linear_2l_forward.1} parent=1 // pred_check_branch
      %40 = sbr.rel (0) target = $region33
    $region32: #{linear_2l_forward.1} parent=1 // pred_region
      _
    $region33: #{linear_2l_forward.1} parent=1 // pred_fallthru
      _
    // Predicated region
    $region34: #{linear_2l_forward.1} parent=1 // pred_check
      _
    $region35: #{linear_2l_forward.1} parent=1 // pred_check_branch
      %42 = sbr.rel (0) target = $region37
    $region36: #{linear_2l_forward.1} parent=1 // pred_region
      _
    $region37: #{linear_2l_forward.1} parent=1 // pred_fallthru
      _
    // Predicated region
    $region38: #{linear_2l_forward.1} parent=1 // pred_check
      _
    $region39: #{linear_2l_forward.1} parent=1 // pred_check_branch
      %44 = sbr.rel (0) target = $region41
    $region40: #{linear_2l_forward.1} parent=1 // pred_region
      %45 = dma.done [#allocation3], 8192
    $region41: #{linear_2l_forward.1} parent=1 // pred_fallthru
      _
    %v47 = vld [vmem:[%s0] sm:$0xff]
    %v48 = vld [vmem:[%s0 + $0x8] sm:$0xff]
    %v49 = vld [vmem:[%s0 + $0x10] sm:$0xff]
    %v50 = vld [vmem:[%s0 + $0x18] sm:$0xff]
    %v51 = vld [vmem:[%s0 + $0x20] sm:$0xff]
    %v52 = vld [vmem:[%s0 + $0x28] sm:$0xff]
    %v53 = vld [vmem:[%s0 + $0x30] sm:$0xff]
    %v54 = vld [vmem:[%s0 + $0x38] sm:$0xff]
    %v55 = vld [vmem:[#allocation2] sm:$0xf]
    %v56 = vld [vmem:[#allocation2 + $0x4] sm:$0xf]
    %v57 = vld [vmem:[#allocation2 + $0x8] sm:$0xf]
    %v58 = vld [vmem:[#allocation2 + $0xc] sm:$0xf]
    %v59 = vld [vmem:[#allocation2 + $0x10] sm:$0xf]
    %v60 = vld [vmem:[#allocation2 + $0x14] sm:$0xf]
    %v61 = vld [vmem:[#allocation2 + $0x18] sm:$0xf]
    %v62 = vld [vmem:[#allocation2 + $0x1c] sm:$0xf]
    %v63 = vld [vmem:[#allocation2 + $0x20] sm:$0xf]
    %v64 = vld [vmem:[#allocation2 + $0x24] sm:$0xf]
    %v65 = vld [vmem:[#allocation2 + $0x28] sm:$0xf]
    %v66 = vld [vmem:[#allocation2 + $0x2c] sm:$0xf]
    %v67 = vld [vmem:[#allocation2 + $0x30] sm:$0xf]
    %v68 = vld [vmem:[#allocation2 + $0x34] sm:$0xf]
    %v69 = vld [vmem:[#allocation2 + $0x38] sm:$0xf]
    %v70 = vld [vmem:[#allocation2 + $0x3c] sm:$0xf]
    %v71 = vld [vmem:[#allocation2 + $0x40] sm:$0xf]
    %v72 = vld [vmem:[#allocation2 + $0x44] sm:$0xf]
    %v73 = vld [vmem:[#allocation2 + $0x48] sm:$0xf]
    %v74 = vld [vmem:[#allocation2 + $0x4c] sm:$0xf]
    %v75 = vld [vmem:[#allocation2 + $0x50] sm:$0xf]
    %v76 = vld [vmem:[#allocation2 + $0x54] sm:$0xf]
    %v77 = vld [vmem:[#allocation2 + $0x58] sm:$0xf]
    %v78 = vld [vmem:[#allocation2 + $0x5c] sm:$0xf]
    %v79 = vld [vmem:[#allocation2 + $0x60] sm:$0xf]
    %v80 = vld [vmem:[#allocation2 + $0x64] sm:$0xf]
    %v81 = vld [vmem:[#allocation2 + $0x68] sm:$0xf]
    %v82 = vld [vmem:[#allocation2 + $0x6c] sm:$0xf]
    %v83 = vld [vmem:[#allocation2 + $0x70] sm:$0xf]
    %v84 = vld [vmem:[#allocation2 + $0x74] sm:$0xf]
    %v85 = vld [vmem:[#allocation2 + $0x78] sm:$0xf]
    %v86 = vld [vmem:[#allocation2 + $0x7c] sm:$0xf]
    %v87 = vld [vmem:[#allocation2 + $0x80] sm:$0xf]
    %v88 = vld [vmem:[#allocation2 + $0x84] sm:$0xf]
    %v89 = vld [vmem:[#allocation2 + $0x88] sm:$0xf]
    %v90 = vld [vmem:[#allocation2 + $0x8c] sm:$0xf]
    %v91 = vld [vmem:[#allocation2 + $0x90] sm:$0xf]
    %v92 = vld [vmem:[#allocation2 + $0x94] sm:$0xf]
    %v93 = vld [vmem:[#allocation2 + $0x98] sm:$0xf]
    %v94 = vld [vmem:[#allocation2 + $0x9c] sm:$0xf]
    %v95 = vld [vmem:[#allocation2 + $0xa0] sm:$0xf]
    %v96 = vld [vmem:[#allocation2 + $0xa4] sm:$0xf]
    %v97 = vld [vmem:[#allocation2 + $0xa8] sm:$0xf]
    %v98 = vld [vmem:[#allocation2 + $0xac] sm:$0xf]
    %v99 = vld [vmem:[#allocation2 + $0xb0] sm:$0xf]
    %v100 = vld [vmem:[#allocation2 + $0xb4] sm:$0xf]
    %v101 = vld [vmem:[#allocation2 + $0xb8] sm:$0xf]
    %v102 = vld [vmem:[#allocation2 + $0xbc] sm:$0xf]
    %v103 = vld [vmem:[#allocation2 + $0xc0] sm:$0xf]
    %v104 = vld [vmem:[#allocation2 + $0xc4] sm:$0xf]
    %v105 = vld [vmem:[#allocation2 + $0xc8] sm:$0xf]
    %v106 = vld [vmem:[#allocation2 + $0xcc] sm:$0xf]
    %v107 = vld [vmem:[#allocation2 + $0xd0] sm:$0xf]
    %v108 = vld [vmem:[#allocation2 + $0xd4] sm:$0xf]
    %v109 = vld [vmem:[#allocation2 + $0xd8] sm:$0xf]
    %v110 = vld [vmem:[#allocation2 + $0xdc] sm:$0xf]
    %v111 = vld [vmem:[#allocation2 + $0xe0] sm:$0xf]
    %v112 = vld [vmem:[#allocation2 + $0xe4] sm:$0xf]
    %v113 = vld [vmem:[#allocation2 + $0xe8] sm:$0xf]
    %v114 = vld [vmem:[#allocation2 + $0xec] sm:$0xf]
    %v115 = vld [vmem:[#allocation2 + $0xf0] sm:$0xf]
    %v116 = vld [vmem:[#allocation2 + $0xf4] sm:$0xf]
    %v117 = vld [vmem:[#allocation2 + $0xf8] sm:$0xf]
    %v118 = vld [vmem:[#allocation2 + $0xfc] sm:$0xf]
    %v119 = vld [vmem:[#allocation2 + $0x100] sm:$0xf]
    %v120 = vld [vmem:[#allocation2 + $0x104] sm:$0xf]
    %v121 = vld [vmem:[#allocation2 + $0x108] sm:$0xf]
    %v122 = vld [vmem:[#allocation2 + $0x10c] sm:$0xf]
    %v123 = vld [vmem:[#allocation2 + $0x110] sm:$0xf]
    %v124 = vld [vmem:[#allocation2 + $0x114] sm:$0xf]
    %v125 = vld [vmem:[#allocation2 + $0x118] sm:$0xf]
    %v126 = vld [vmem:[#allocation2 + $0x11c] sm:$0xf]
    %v127 = vld [vmem:[#allocation2 + $0x120] sm:$0xf]
    %v128 = vld [vmem:[#allocation2 + $0x124] sm:$0xf]
    %v129 = vld [vmem:[#allocation2 + $0x128] sm:$0xf]
    %v130 = vld [vmem:[#allocation2 + $0x12c] sm:$0xf]
    %v131 = vld [vmem:[#allocation2 + $0x130] sm:$0xf]
    %v132 = vld [vmem:[#allocation2 + $0x134] sm:$0xf]
    %v133 = vld [vmem:[#allocation2 + $0x138] sm:$0xf]
    %v134 = vld [vmem:[#allocation2 + $0x13c] sm:$0xf]
    %v135 = vld [vmem:[#allocation2 + $0x140] sm:$0xf]
    %v136 = vld [vmem:[#allocation2 + $0x144] sm:$0xf]
    %v137 = vld [vmem:[#allocation2 + $0x148] sm:$0xf]
    %v138 = vld [vmem:[#allocation2 + $0x14c] sm:$0xf]
    %v139 = vld [vmem:[#allocation2 + $0x150] sm:$0xf]
    %v140 = vld [vmem:[#allocation2 + $0x154] sm:$0xf]
    %v141 = vld [vmem:[#allocation2 + $0x158] sm:$0xf]
    %v142 = vld [vmem:[#allocation2 + $0x15c] sm:$0xf]
    %v143 = vld [vmem:[#allocation2 + $0x160] sm:$0xf]
    %v144 = vld [vmem:[#allocation2 + $0x164] sm:$0xf]
    %v145 = vld [vmem:[#allocation2 + $0x168] sm:$0xf]
    %v146 = vld [vmem:[#allocation2 + $0x16c] sm:$0xf]
    %v147 = vld [vmem:[#allocation2 + $0x170] sm:$0xf]
    %v148 = vld [vmem:[#allocation2 + $0x174] sm:$0xf]
    %v149 = vld [vmem:[#allocation2 + $0x178] sm:$0xf]
    %v150 = vld [vmem:[#allocation2 + $0x17c] sm:$0xf]
    %v151 = vld [vmem:[#allocation2 + $0x180] sm:$0xf]
    %v152 = vld [vmem:[#allocation2 + $0x184] sm:$0xf]
    %v153 = vld [vmem:[#allocation2 + $0x188] sm:$0xf]
    %v154 = vld [vmem:[#allocation2 + $0x18c] sm:$0xf]
    %v155 = vld [vmem:[#allocation2 + $0x190] sm:$0xf]
    %v156 = vld [vmem:[#allocation2 + $0x194] sm:$0xf]
    %v157 = vld [vmem:[#allocation2 + $0x198] sm:$0xf]
    %v158 = vld [vmem:[#allocation2 + $0x19c] sm:$0xf]
    %v159 = vld [vmem:[#allocation2 + $0x1a0] sm:$0xf]
    %v160 = vld [vmem:[#allocation2 + $0x1a4] sm:$0xf]
    %v161 = vld [vmem:[#allocation2 + $0x1a8] sm:$0xf]
    %v162 = vld [vmem:[#allocation2 + $0x1ac] sm:$0xf]
    %v163 = vld [vmem:[#allocation2 + $0x1b0] sm:$0xf]
    %v164 = vld [vmem:[#allocation2 + $0x1b4] sm:$0xf]
    %v165 = vld [vmem:[#allocation2 + $0x1b8] sm:$0xf]
    %v166 = vld [vmem:[#allocation2 + $0x1bc] sm:$0xf]
    %v167 = vld [vmem:[#allocation2 + $0x1c0] sm:$0xf]
    %v168 = vld [vmem:[#allocation2 + $0x1c4] sm:$0xf]
    %v169 = vld [vmem:[#allocation2 + $0x1c8] sm:$0xf]
    %v170 = vld [vmem:[#allocation2 + $0x1cc] sm:$0xf]
    %v171 = vld [vmem:[#allocation2 + $0x1d0] sm:$0xf]
    %v172 = vld [vmem:[#allocation2 + $0x1d4] sm:$0xf]
    %v173 = vld [vmem:[#allocation2 + $0x1d8] sm:$0xf]
    %v174 = vld [vmem:[#allocation2 + $0x1dc] sm:$0xf]
    %v175 = vld [vmem:[#allocation2 + $0x1e0] sm:$0xf]
    %v176 = vld [vmem:[#allocation2 + $0x1e4] sm:$0xf]
    %v177 = vld [vmem:[#allocation2 + $0x1e8] sm:$0xf]
    %v178 = vld [vmem:[#allocation2 + $0x1ec] sm:$0xf]
    %v179 = vld [vmem:[#allocation2 + $0x1f0] sm:$0xf]
    %v180 = vld [vmem:[#allocation2 + $0x1f4] sm:$0xf]
    %v181 = vld [vmem:[#allocation2 + $0x1f8] sm:$0xf]
    %v182 = vld [vmem:[#allocation2 + $0x1fc] sm:$0xf]
    %v183 = vld [vmem:[%s2] sm:$0x1]
    %v185 = vlaneseq
    %v186 = vshrl.u32 %v185, 7
    %v187 = vsub.s32 0, %v186
    %v188 = vrot.slane %v183, %v187
    %v198 = vunpack.c.l.b16 %v47
    %v199 = vunpack.c.h.b16 %v47
    %v200 = vunpack.c.l.b16 %v48
    %v201 = vunpack.c.h.b16 %v48
    %v202 = vunpack.c.l.b16 %v49
    %v203 = vunpack.c.h.b16 %v49
    %v204 = vunpack.c.l.b16 %v50
    %v205 = vunpack.c.h.b16 %v50
    %v206 = vunpack.c.l.b16 %v51
    %v207 = vunpack.c.h.b16 %v51
    %v208 = vunpack.c.l.b16 %v52
    %v209 = vunpack.c.h.b16 %v52
    %v210 = vunpack.c.l.b16 %v53
    %v211 = vunpack.c.h.b16 %v53
    %v212 = vunpack.c.l.b16 %v54
    %v213 = vunpack.c.h.b16 %v54
    %v214 = vpack.c.b16 %v206, %v198
    %v215 = vpack.c.b16 %v207, %v199
    %v216 = vpack.c.b16 %v208, %v200
    %v217 = vpack.c.b16 %v209, %v201
    %v218 = vpack.c.b16 %v210, %v202
    %v219 = vpack.c.b16 %v211, %v203
    %v220 = vpack.c.b16 %v212, %v204
    %v221 = vpack.c.b16 %v213, %v205
    %v358 = vunpack.c.l.b16 %v55
    %v359 = vunpack.c.l.b16 %v56
    %v360 = vunpack.c.l.b16 %v57
    %v361 = vunpack.c.l.b16 %v58
    %v362 = vunpack.c.l.b16 %v59
    %v363 = vunpack.c.l.b16 %v60
    %v364 = vunpack.c.l.b16 %v61
    %v365 = vunpack.c.l.b16 %v62
    %v366 = vunpack.c.l.b16 %v63
    %v367 = vunpack.c.l.b16 %v64
    %v368 = vunpack.c.l.b16 %v65
    %v369 = vunpack.c.l.b16 %v66
    %v370 = vunpack.c.l.b16 %v67
    %v371 = vunpack.c.l.b16 %v68
    %v372 = vunpack.c.l.b16 %v69
    %v373 = vunpack.c.l.b16 %v70
    %v374 = vunpack.c.l.b16 %v71
    %v375 = vunpack.c.l.b16 %v72
    %v376 = vunpack.c.l.b16 %v73
    %v377 = vunpack.c.l.b16 %v74
    %v378 = vunpack.c.l.b16 %v75
    %v379 = vunpack.c.l.b16 %v76
    %v380 = vunpack.c.l.b16 %v77
    %v381 = vunpack.c.l.b16 %v78
    %v382 = vunpack.c.l.b16 %v79
    %v383 = vunpack.c.l.b16 %v80
    %v384 = vunpack.c.l.b16 %v81
    %v385 = vunpack.c.l.b16 %v82
    %v386 = vunpack.c.l.b16 %v83
    %v387 = vunpack.c.l.b16 %v84
    %v388 = vunpack.c.l.b16 %v85
    %v389 = vunpack.c.l.b16 %v86
    %v390 = vunpack.c.l.b16 %v87
    %v391 = vunpack.c.l.b16 %v88
    %v392 = vunpack.c.l.b16 %v89
    %v393 = vunpack.c.l.b16 %v90
    %v394 = vunpack.c.l.b16 %v91
    %v395 = vunpack.c.l.b16 %v92
    %v396 = vunpack.c.l.b16 %v93
    %v397 = vunpack.c.l.b16 %v94
    %v398 = vunpack.c.l.b16 %v95
    %v399 = vunpack.c.l.b16 %v96
    %v400 = vunpack.c.l.b16 %v97
    %v401 = vunpack.c.l.b16 %v98
    %v402 = vunpack.c.l.b16 %v99
    %v403 = vunpack.c.l.b16 %v100
    %v404 = vunpack.c.l.b16 %v101
    %v405 = vunpack.c.l.b16 %v102
    %v406 = vunpack.c.l.b16 %v103
    %v407 = vunpack.c.l.b16 %v104
    %v408 = vunpack.c.l.b16 %v105
    %v409 = vunpack.c.l.b16 %v106
    %v410 = vunpack.c.l.b16 %v107
    %v411 = vunpack.c.l.b16 %v108
    %v412 = vunpack.c.l.b16 %v109
    %v413 = vunpack.c.l.b16 %v110
    %v414 = vunpack.c.l.b16 %v111
    %v415 = vunpack.c.l.b16 %v112
    %v416 = vunpack.c.l.b16 %v113
    %v417 = vunpack.c.l.b16 %v114
    %v418 = vunpack.c.l.b16 %v115
    %v419 = vunpack.c.l.b16 %v116
    %v420 = vunpack.c.l.b16 %v117
    %v421 = vunpack.c.l.b16 %v118
    %v422 = vunpack.c.l.b16 %v119
    %v423 = vunpack.c.l.b16 %v120
    %v424 = vunpack.c.l.b16 %v121
    %v425 = vunpack.c.l.b16 %v122
    %v426 = vunpack.c.l.b16 %v123
    %v427 = vunpack.c.l.b16 %v124
    %v428 = vunpack.c.l.b16 %v125
    %v429 = vunpack.c.l.b16 %v126
    %v430 = vunpack.c.l.b16 %v127
    %v431 = vunpack.c.l.b16 %v128
    %v432 = vunpack.c.l.b16 %v129
    %v433 = vunpack.c.l.b16 %v130
    %v434 = vunpack.c.l.b16 %v131
    %v435 = vunpack.c.l.b16 %v132
    %v436 = vunpack.c.l.b16 %v133
    %v437 = vunpack.c.l.b16 %v134
    %v438 = vunpack.c.l.b16 %v135
    %v439 = vunpack.c.l.b16 %v136
    %v440 = vunpack.c.l.b16 %v137
    %v441 = vunpack.c.l.b16 %v138
    %v442 = vunpack.c.l.b16 %v139
    %v443 = vunpack.c.l.b16 %v140
    %v444 = vunpack.c.l.b16 %v141
    %v445 = vunpack.c.l.b16 %v142
    %v446 = vunpack.c.l.b16 %v143
    %v447 = vunpack.c.l.b16 %v144
    %v448 = vunpack.c.l.b16 %v145
    %v449 = vunpack.c.l.b16 %v146
    %v450 = vunpack.c.l.b16 %v147
    %v451 = vunpack.c.l.b16 %v148
    %v452 = vunpack.c.l.b16 %v149
    %v453 = vunpack.c.l.b16 %v150
    %v454 = vunpack.c.l.b16 %v151
    %v455 = vunpack.c.l.b16 %v152
    %v456 = vunpack.c.l.b16 %v153
    %v457 = vunpack.c.l.b16 %v154
    %v458 = vunpack.c.l.b16 %v155
    %v459 = vunpack.c.l.b16 %v156
    %v460 = vunpack.c.l.b16 %v157
    %v461 = vunpack.c.l.b16 %v158
    %v462 = vunpack.c.l.b16 %v159
    %v463 = vunpack.c.l.b16 %v160
    %v464 = vunpack.c.l.b16 %v161
    %v465 = vunpack.c.l.b16 %v162
    %v466 = vunpack.c.l.b16 %v163
    %v467 = vunpack.c.l.b16 %v164
    %v468 = vunpack.c.l.b16 %v165
    %v469 = vunpack.c.l.b16 %v166
    %v470 = vunpack.c.l.b16 %v167
    %v471 = vunpack.c.l.b16 %v168
    %v472 = vunpack.c.l.b16 %v169
    %v473 = vunpack.c.l.b16 %v170
    %v474 = vunpack.c.l.b16 %v171
    %v475 = vunpack.c.l.b16 %v172
    %v476 = vunpack.c.l.b16 %v173
    %v477 = vunpack.c.l.b16 %v174
    %v478 = vunpack.c.l.b16 %v175
    %v479 = vunpack.c.l.b16 %v176
    %v480 = vunpack.c.l.b16 %v177
    %v481 = vunpack.c.l.b16 %v178
    %v482 = vunpack.c.l.b16 %v179
    %v483 = vunpack.c.l.b16 %v180
    %v484 = vunpack.c.l.b16 %v181
    %v485 = vunpack.c.l.b16 %v182
    %v486 = vpack.c.b16 %v359, %v358
    %v487 = vpack.c.b16 %v361, %v360
    %v488 = vpack.c.b16 %v363, %v362
    %v489 = vpack.c.b16 %v365, %v364
    %v490 = vpack.c.b16 %v367, %v366
    %v491 = vpack.c.b16 %v369, %v368
    %v492 = vpack.c.b16 %v371, %v370
    %v493 = vpack.c.b16 %v373, %v372
    %v494 = vpack.c.b16 %v375, %v374
    %v495 = vpack.c.b16 %v377, %v376
    %v496 = vpack.c.b16 %v379, %v378
    %v497 = vpack.c.b16 %v381, %v380
    %v498 = vpack.c.b16 %v383, %v382
    %v499 = vpack.c.b16 %v385, %v384
    %v500 = vpack.c.b16 %v387, %v386
    %v501 = vpack.c.b16 %v389, %v388
    %v502 = vpack.c.b16 %v391, %v390
    %v503 = vpack.c.b16 %v393, %v392
    %v504 = vpack.c.b16 %v395, %v394
    %v505 = vpack.c.b16 %v397, %v396
    %v506 = vpack.c.b16 %v399, %v398
    %v507 = vpack.c.b16 %v401, %v400
    %v508 = vpack.c.b16 %v403, %v402
    %v509 = vpack.c.b16 %v405, %v404
    %v510 = vpack.c.b16 %v407, %v406
    %v511 = vpack.c.b16 %v409, %v408
    %v512 = vpack.c.b16 %v411, %v410
    %v513 = vpack.c.b16 %v413, %v412
    %v514 = vpack.c.b16 %v415, %v414
    %v515 = vpack.c.b16 %v417, %v416
    %v516 = vpack.c.b16 %v419, %v418
    %v517 = vpack.c.b16 %v421, %v420
    %v518 = vpack.c.b16 %v423, %v422
    %v519 = vpack.c.b16 %v425, %v424
    %v520 = vpack.c.b16 %v427, %v426
    %v521 = vpack.c.b16 %v429, %v428
    %v522 = vpack.c.b16 %v431, %v430
    %v523 = vpack.c.b16 %v433, %v432
    %v524 = vpack.c.b16 %v435, %v434
    %v525 = vpack.c.b16 %v437, %v436
    %v526 = vpack.c.b16 %v439, %v438
    %v527 = vpack.c.b16 %v441, %v440
    %v528 = vpack.c.b16 %v443, %v442
    %v529 = vpack.c.b16 %v445, %v444
    %v530 = vpack.c.b16 %v447, %v446
    %v531 = vpack.c.b16 %v449, %v448
    %v532 = vpack.c.b16 %v451, %v450
    %v533 = vpack.c.b16 %v453, %v452
    %v534 = vpack.c.b16 %v455, %v454
    %v535 = vpack.c.b16 %v457, %v456
    %v536 = vpack.c.b16 %v459, %v458
    %v537 = vpack.c.b16 %v461, %v460
    %v538 = vpack.c.b16 %v463, %v462
    %v539 = vpack.c.b16 %v465, %v464
    %v540 = vpack.c.b16 %v467, %v466
    %v541 = vpack.c.b16 %v469, %v468
    %v542 = vpack.c.b16 %v471, %v470
    %v543 = vpack.c.b16 %v473, %v472
    %v544 = vpack.c.b16 %v475, %v474
    %v545 = vpack.c.b16 %v477, %v476
    %v546 = vpack.c.b16 %v479, %v478
    %v547 = vpack.c.b16 %v481, %v480
    %v548 = vpack.c.b16 %v483, %v482
    %v549 = vpack.c.b16 %v485, %v484
    %614 = vmatprep.subr.bf16.mxu0 0
    %615 = vmatpush1.bf16.msra.mxu0 %v486
    %616 = vmatprep.subr.bf16.mxu0 0
    %617 = vmatpush1.bf16.msra.mxu0 %v487
    %618 = vmatprep.subr.bf16.mxu0 0
    %619 = vmatpush1.bf16.msra.mxu0 %v488
    %620 = vmatprep.subr.bf16.mxu0 0
    %621 = vmatpush1.bf16.msra.mxu0 %v489
    %622 = vmatprep.subr.bf16.mxu0 0
    %623 = vmatpush1.bf16.msra.mxu0 %v490
    %624 = vmatprep.subr.bf16.mxu0 0
    %625 = vmatpush1.bf16.msra.mxu0 %v491
    %626 = vmatprep.subr.bf16.mxu0 0
    %627 = vmatpush1.bf16.msra.mxu0 %v492
    %628 = vmatprep.subr.bf16.mxu0 0
    %629 = vmatpush1.bf16.msra.mxu0 %v493
    %630 = vmatprep.subr.bf16.mxu0 0
    %631 = vmatpush1.bf16.msra.mxu0 %v494
    %632 = vmatprep.subr.bf16.mxu0 0
    %633 = vmatpush1.bf16.msra.mxu0 %v495
    %634 = vmatprep.subr.bf16.mxu0 0
    %635 = vmatpush1.bf16.msra.mxu0 %v496
    %636 = vmatprep.subr.bf16.mxu0 0
    %637 = vmatpush1.bf16.msra.mxu0 %v497
    %638 = vmatprep.subr.bf16.mxu0 0
    %639 = vmatpush1.bf16.msra.mxu0 %v498
    %640 = vmatprep.subr.bf16.mxu0 0
    %641 = vmatpush1.bf16.msra.mxu0 %v499
    %642 = vmatprep.subr.bf16.mxu0 0
    %643 = vmatpush1.bf16.msra.mxu0 %v500
    %644 = vmatprep.subr.bf16.mxu0 0
    %645 = vmatpush1.bf16.msra.mxu0 %v501
    %646 = vmatprep.mubr.bf16.mxu0 %v215
    %647 = vmatmul.mubr.bf16.gmra.mrb[0].mxu0 %v214
    %v648 = vpop.f32.mrb[0].mxu0
    %v649 = vadd.f32 %v188, %v648
    %v650 = vpop.f32.mrb[0].mxu0
    %v651 = vpop.f32.mrb[0].mxu0
    %v652 = vadd.f32 %v188, %v651
    %v653 = vpop.f32.mrb[0].mxu0
    %654 = vdwg.mxu0
    %655 = vmatprep.subr.bf16.mxu0 0
    %656 = vmatpush1.bf16.msra.mxu0 %v502
    %657 = vmatprep.subr.bf16.mxu0 0
    %658 = vmatpush1.bf16.msra.mxu0 %v503
    %659 = vmatprep.subr.bf16.mxu0 0
    %660 = vmatpush1.bf16.msra.mxu0 %v504
    %661 = vmatprep.subr.bf16.mxu0 0
    %662 = vmatpush1.bf16.msra.mxu0 %v505
    %663 = vmatprep.subr.bf16.mxu0 0
    %664 = vmatpush1.bf16.msra.mxu0 %v506
    %665 = vmatprep.subr.bf16.mxu0 0
    %666 = vmatpush1.bf16.msra.mxu0 %v507
    %667 = vmatprep.subr.bf16.mxu0 0
    %668 = vmatpush1.bf16.msra.mxu0 %v508
    %669 = vmatprep.subr.bf16.mxu0 0
    %670 = vmatpush1.bf16.msra.mxu0 %v509
    %671 = vmatprep.subr.bf16.mxu0 0
    %672 = vmatpush1.bf16.msra.mxu0 %v510
    %673 = vmatprep.subr.bf16.mxu0 0
    %674 = vmatpush1.bf16.msra.mxu0 %v511
    %675 = vmatprep.subr.bf16.mxu0 0
    %676 = vmatpush1.bf16.msra.mxu0 %v512
    %677 = vmatprep.subr.bf16.mxu0 0
    %678 = vmatpush1.bf16.msra.mxu0 %v513
    %679 = vmatprep.subr.bf16.mxu0 0
    %680 = vmatpush1.bf16.msra.mxu0 %v514
    %681 = vmatprep.subr.bf16.mxu0 0
    %682 = vmatpush1.bf16.msra.mxu0 %v515
    %683 = vmatprep.subr.bf16.mxu0 0
    %684 = vmatpush1.bf16.msra.mxu0 %v516
    %685 = vmatprep.subr.bf16.mxu0 0
    %686 = vmatpush1.bf16.msra.mxu0 %v517
    %687 = vmatprep.mubr.bf16.mxu0 %v217
    %688 = vmatmul.mubr.bf16.gmra.mrb[0].mxu0 %v216
    %v689 = vpop.f32.mrb[0].mxu0
    %v690 = vadd.f32 %v649, %v689
    %v691 = vpop.f32.mrb[0].mxu0
    %v692 = vpop.f32.mrb[0].mxu0
    %v693 = vadd.f32 %v652, %v692
    %v694 = vpop.f32.mrb[0].mxu0
    %695 = vdwg.mxu0
    %696 = vmatprep.subr.bf16.mxu0 0
    %697 = vmatpush1.bf16.msra.mxu0 %v518
    %698 = vmatprep.subr.bf16.mxu0 0
    %699 = vmatpush1.bf16.msra.mxu0 %v519
    %700 = vmatprep.subr.bf16.mxu0 0
    %701 = vmatpush1.bf16.msra.mxu0 %v520
    %702 = vmatprep.subr.bf16.mxu0 0
    %703 = vmatpush1.bf16.msra.mxu0 %v521
    %704 = vmatprep.subr.bf16.mxu0 0
    %705 = vmatpush1.bf16.msra.mxu0 %v522
    %706 = vmatprep.subr.bf16.mxu0 0
    %707 = vmatpush1.bf16.msra.mxu0 %v523
    %708 = vmatprep.subr.bf16.mxu0 0
    %709 = vmatpush1.bf16.msra.mxu0 %v524
    %710 = vmatprep.subr.bf16.mxu0 0
    %711 = vmatpush1.bf16.msra.mxu0 %v525
    %712 = vmatprep.subr.bf16.mxu0 0
    %713 = vmatpush1.bf16.msra.mxu0 %v526
    %714 = vmatprep.subr.bf16.mxu0 0
    %715 = vmatpush1.bf16.msra.mxu0 %v527
    %716 = vmatprep.subr.bf16.mxu0 0
    %717 = vmatpush1.bf16.msra.mxu0 %v528
    %718 = vmatprep.subr.bf16.mxu0 0
    %719 = vmatpush1.bf16.msra.mxu0 %v529
    %720 = vmatprep.subr.bf16.mxu0 0
    %721 = vmatpush1.bf16.msra.mxu0 %v530
    %722 = vmatprep.subr.bf16.mxu0 0
    %723 = vmatpush1.bf16.msra.mxu0 %v531
    %724 = vmatprep.subr.bf16.mxu0 0
    %725 = vmatpush1.bf16.msra.mxu0 %v532
    %726 = vmatprep.subr.bf16.mxu0 0
    %727 = vmatpush1.bf16.msra.mxu0 %v533
    %728 = vmatprep.mubr.bf16.mxu0 %v219
    %729 = vmatmul.mubr.bf16.gmra.mrb[0].mxu0 %v218
    %v730 = vpop.f32.mrb[0].mxu0
    %v731 = vadd.f32 %v690, %v730
    %v732 = vpop.f32.mrb[0].mxu0
    %v733 = vpop.f32.mrb[0].mxu0
    %v734 = vadd.f32 %v693, %v733
    %v735 = vpop.f32.mrb[0].mxu0
    %736 = vdwg.mxu0
    %737 = vmatprep.subr.bf16.mxu0 0
    %738 = vmatpush1.bf16.msra.mxu0 %v534
    %739 = vmatprep.subr.bf16.mxu0 0
    %740 = vmatpush1.bf16.msra.mxu0 %v535
    %741 = vmatprep.subr.bf16.mxu0 0
    %742 = vmatpush1.bf16.msra.mxu0 %v536
    %743 = vmatprep.subr.bf16.mxu0 0
    %744 = vmatpush1.bf16.msra.mxu0 %v537
    %745 = vmatprep.subr.bf16.mxu0 0
    %746 = vmatpush1.bf16.msra.mxu0 %v538
    %747 = vmatprep.subr.bf16.mxu0 0
    %748 = vmatpush1.bf16.msra.mxu0 %v539
    %749 = vmatprep.subr.bf16.mxu0 0
    %750 = vmatpush1.bf16.msra.mxu0 %v540
    %751 = vmatprep.subr.bf16.mxu0 0
    %752 = vmatpush1.bf16.msra.mxu0 %v541
    %753 = vmatprep.subr.bf16.mxu0 0
    %754 = vmatpush1.bf16.msra.mxu0 %v542
    %755 = vmatprep.subr.bf16.mxu0 0
    %756 = vmatpush1.bf16.msra.mxu0 %v543
    %757 = vmatprep.subr.bf16.mxu0 0
    %758 = vmatpush1.bf16.msra.mxu0 %v544
    %759 = vmatprep.subr.bf16.mxu0 0
    %760 = vmatpush1.bf16.msra.mxu0 %v545
    %761 = vmatprep.subr.bf16.mxu0 0
    %762 = vmatpush1.bf16.msra.mxu0 %v546
    %763 = vmatprep.subr.bf16.mxu0 0
    %764 = vmatpush1.bf16.msra.mxu0 %v547
    %765 = vmatprep.subr.bf16.mxu0 0
    %766 = vmatpush1.bf16.msra.mxu0 %v548
    %767 = vmatprep.subr.bf16.mxu0 0
    %768 = vmatpush1.bf16.msra.mxu0 %v549
    %769 = vmatprep.mubr.bf16.mxu0 %v221
    %770 = vmatmul.mubr.bf16.gmra.mrb[0].mxu0 %v220
    %v771 = vpop.f32.mrb[0].mxu0
    %v772 = vadd.f32 %v731, %v771
    %v773 = vpop.f32.mrb[0].mxu0
    %v774 = vpop.f32.mrb[0].mxu0
    %v775 = vadd.f32 %v734, %v774
    %v776 = vpop.f32.mrb[0].mxu0
    %777 = vdwg.mxu0
    %vm778 = vcmp.ge.f32.partialorder %v772, 0.0
    %vm779 = vcmp.ge.f32.partialorder %v775, 0.0
    %v780 = vmul.f32 %v772, 0.01
    %v781 = vmul.f32 %v775, 0.01
    %v782 = vsel %vm778, %v772, %v780
    %v783 = vsel %vm779, %v775, %v781
    %v784 = vpack.c.bf16 %v783, %v782
    %v785 = vld [vmem:[%s3] sm:$0xf]
    %v786 = vld [vmem:[%s3 + $0x4] sm:$0xf]
    %v787 = vld [vmem:[%s3 + $0x8] sm:$0xf]
    %v788 = vld [vmem:[%s3 + $0xc] sm:$0xf]
    %v789 = vld [vmem:[%s3 + $0x10] sm:$0xf]
    %v790 = vld [vmem:[%s3 + $0x14] sm:$0xf]
    %v791 = vld [vmem:[%s3 + $0x18] sm:$0xf]
    %v792 = vld [vmem:[%s3 + $0x1c] sm:$0xf]
    %v793 = vld [vmem:[%s3 + $0x20] sm:$0xf]
    %v794 = vld [vmem:[%s3 + $0x24] sm:$0xf]
    %v795 = vld [vmem:[%s3 + $0x28] sm:$0xf]
    %v796 = vld [vmem:[%s3 + $0x2c] sm:$0xf]
    %v797 = vld [vmem:[%s3 + $0x30] sm:$0xf]
    %v798 = vld [vmem:[%s3 + $0x34] sm:$0xf]
    %v799 = vld [vmem:[%s3 + $0x38] sm:$0xf]
    %v800 = vld [vmem:[%s3 + $0x3c] sm:$0xf]
    %v801 = vld [vmem:[%s4] sm:$0x1]
    %v803 = vlaneseq
    %v804 = vshrl.u32 %v803, 7
    %v805 = vsub.s32 0, %v804
    %v806 = vrot.slane %v801, %v805
    %v824 = vunpack.c.l.b16 %v785
    %v825 = vunpack.c.l.b16 %v786
    %v826 = vunpack.c.l.b16 %v787
    %v827 = vunpack.c.l.b16 %v788
    %v828 = vunpack.c.l.b16 %v789
    %v829 = vunpack.c.l.b16 %v790
    %v830 = vunpack.c.l.b16 %v791
    %v831 = vunpack.c.l.b16 %v792
    %v832 = vunpack.c.l.b16 %v793
    %v833 = vunpack.c.l.b16 %v794
    %v834 = vunpack.c.l.b16 %v795
    %v835 = vunpack.c.l.b16 %v796
    %v836 = vunpack.c.l.b16 %v797
    %v837 = vunpack.c.l.b16 %v798
    %v838 = vunpack.c.l.b16 %v799
    %v839 = vunpack.c.l.b16 %v800
    %v840 = vpack.c.b16 %v825, %v824
    %v841 = vpack.c.b16 %v827, %v826
    %v842 = vpack.c.b16 %v829, %v828
    %v843 = vpack.c.b16 %v831, %v830
    %v844 = vpack.c.b16 %v833, %v832
    %v845 = vpack.c.b16 %v835, %v834
    %v846 = vpack.c.b16 %v837, %v836
    %v847 = vpack.c.b16 %v839, %v838
    %856 = vmatprep.subr.bf16.mxu0 0
    %857 = vmatpush1.bf16.msra.mxu0 %v840
    %858 = vmatprep.subr.bf16.mxu0 0
    %859 = vmatpush1.bf16.msra.mxu0 %v841
    %860 = vmatprep.subr.bf16.mxu0 0
    %861 = vmatpush1.bf16.msra.mxu0 %v842
    %862 = vmatprep.subr.bf16.mxu0 0
    %863 = vmatpush1.bf16.msra.mxu0 %v843
    %864 = vmatprep.subr.bf16.mxu0 0
    %865 = vmatpush1.bf16.msra.mxu0 %v844
    %866 = vmatprep.subr.bf16.mxu0 0
    %867 = vmatpush1.bf16.msra.mxu0 %v845
    %868 = vmatprep.subr.bf16.mxu0 0
    %869 = vmatpush1.bf16.msra.mxu0 %v846
    %870 = vmatprep.subr.bf16.mxu0 0
    %871 = vmatpush1.bf16.msra.mxu0 %v847
    %872 = vmatprep.subr.bf16.mxu0 0
    %873 = vmatpush1.bf16.msra.mxu0 0
    %874 = vmatprep.subr.bf16.mxu0 0
    %875 = vmatpush1.bf16.msra.mxu0 0
    %876 = vmatprep.subr.bf16.mxu0 0
    %877 = vmatpush1.bf16.msra.mxu0 0
    %878 = vmatprep.subr.bf16.mxu0 0
    %879 = vmatpush1.bf16.msra.mxu0 0
    %880 = vmatprep.subr.bf16.mxu0 0
    %881 = vmatpush1.bf16.msra.mxu0 0
    %882 = vmatprep.subr.bf16.mxu0 0
    %883 = vmatpush1.bf16.msra.mxu0 0
    %884 = vmatprep.subr.bf16.mxu0 0
    %885 = vmatpush1.bf16.msra.mxu0 0
    %886 = vmatprep.subr.bf16.mxu0 0
    %887 = vmatpush1.bf16.msra.mxu0 0
    %888 = vmatprep.mubr.bf16.mxu0 0
    %889 = vmatmul.mubr.bf16.gmra.mrb[0].mxu0 %v784
    %v890 = vpop.f32.mrb[0].mxu0
    %v891 = vadd.f32 %v806, %v890
    %v892 = vpop.f32.mrb[0].mxu0
    %v893 = vpop.f32.mrb[0].mxu0
    %v894 = vadd.f32 %v806, %v893
    %v895 = vpop.f32.mrb[0].mxu0
    %896 = vdwg.mxu0
    %vm897 = vcmp.ge.f32.partialorder %v891, 0.0
    %vm898 = vcmp.ge.f32.partialorder %v894, 0.0
    %v899 = vmul.f32 %v891, 0.01
    %v900 = vmul.f32 %v894, 0.01
    %v901 = vsel %vm897, %v891, %v899
    %v902 = vsel %vm898, %v894, %v900
    %v903 = vpack.c.bf16 %v902, %v901
    %v904 = vld [vmem:[%s5] sm:$0xf]
    %v905 = vld [vmem:[%s5 + $0x4] sm:$0xf]
    %v906 = vld [vmem:[%s5 + $0x8] sm:$0xf]
    %v907 = vld [vmem:[%s5 + $0xc] sm:$0xf]
    %v908 = vld [vmem:[%s5 + $0x10] sm:$0xf]
    %v909 = vld [vmem:[%s5 + $0x14] sm:$0xf]
    %v910 = vld [vmem:[%s5 + $0x18] sm:$0xf]
    %v911 = vld [vmem:[%s5 + $0x1c] sm:$0xf]
    %v912 = vld [vmem:[%s5 + $0x20] sm:$0xf]
    %v913 = vld [vmem:[%s5 + $0x24] sm:$0xf]
    %v914 = vld [vmem:[%s5 + $0x28] sm:$0xf]
    %v915 = vld [vmem:[%s5 + $0x2c] sm:$0xf]
    %v916 = vld [vmem:[%s5 + $0x30] sm:$0xf]
    %v917 = vld [vmem:[%s5 + $0x34] sm:$0xf]
    %v918 = vld [vmem:[%s5 + $0x38] sm:$0xf]
    %v919 = vld [vmem:[%s5 + $0x3c] sm:$0xf]
    %v920 = vld [vmem:[%s6] sm:$0x1]
    %v922 = vlaneseq
    %v923 = vshrl.u32 %v922, 7
    %v924 = vsub.s32 0, %v923
    %v925 = vrot.slane %v920, %v924
    %v943 = vunpack.c.l.b16 %v904
    %v944 = vunpack.c.l.b16 %v905
    %v945 = vunpack.c.l.b16 %v906
    %v946 = vunpack.c.l.b16 %v907
    %v947 = vunpack.c.l.b16 %v908
    %v948 = vunpack.c.l.b16 %v909
    %v949 = vunpack.c.l.b16 %v910
    %v950 = vunpack.c.l.b16 %v911
    %v951 = vunpack.c.l.b16 %v912
    %v952 = vunpack.c.l.b16 %v913
    %v953 = vunpack.c.l.b16 %v914
    %v954 = vunpack.c.l.b16 %v915
    %v955 = vunpack.c.l.b16 %v916
    %v956 = vunpack.c.l.b16 %v917
    %v957 = vunpack.c.l.b16 %v918
    %v958 = vunpack.c.l.b16 %v919
    %v959 = vpack.c.b16 %v944, %v943
    %v960 = vpack.c.b16 %v946, %v945
    %v961 = vpack.c.b16 %v948, %v947
    %v962 = vpack.c.b16 %v950, %v949
    %v963 = vpack.c.b16 %v952, %v951
    %v964 = vpack.c.b16 %v954, %v953
    %v965 = vpack.c.b16 %v956, %v955
    %v966 = vpack.c.b16 %v958, %v957
    %975 = vmatprep.subr.bf16.mxu0 0
    %976 = vmatpush1.bf16.msra.mxu0 %v959
    %977 = vmatprep.subr.bf16.mxu0 0
    %978 = vmatpush1.bf16.msra.mxu0 %v960
    %979 = vmatprep.subr.bf16.mxu0 0
    %980 = vmatpush1.bf16.msra.mxu0 %v961
    %981 = vmatprep.subr.bf16.mxu0 0
    %982 = vmatpush1.bf16.msra.mxu0 %v962
    %983 = vmatprep.subr.bf16.mxu0 0
    %984 = vmatpush1.bf16.msra.mxu0 %v963
    %985 = vmatprep.subr.bf16.mxu0 0
    %986 = vmatpush1.bf16.msra.mxu0 %v964
    %987 = vmatprep.subr.bf16.mxu0 0
    %988 = vmatpush1.bf16.msra.mxu0 %v965
    %989 = vmatprep.subr.bf16.mxu0 0
    %990 = vmatpush1.bf16.msra.mxu0 %v966
    %991 = vmatprep.subr.bf16.mxu0 0
    %992 = vmatpush1.bf16.msra.mxu0 0
    %993 = vmatprep.subr.bf16.mxu0 0
    %994 = vmatpush1.bf16.msra.mxu0 0
    %995 = vmatprep.subr.bf16.mxu0 0
    %996 = vmatpush1.bf16.msra.mxu0 0
    %997 = vmatprep.subr.bf16.mxu0 0
    %998 = vmatpush1.bf16.msra.mxu0 0
    %999 = vmatprep.subr.bf16.mxu0 0
    %1000 = vmatpush1.bf16.msra.mxu0 0
    %1001 = vmatprep.subr.bf16.mxu0 0
    %1002 = vmatpush1.bf16.msra.mxu0 0
    %1003 = vmatprep.subr.bf16.mxu0 0
    %1004 = vmatpush1.bf16.msra.mxu0 0
    %1005 = vmatprep.subr.bf16.mxu0 0
    %1006 = vmatpush1.bf16.msra.mxu0 0
    %1007 = vmatprep.mubr.bf16.mxu0 0
    %1008 = vmatmul.mubr.bf16.gmra.mrb[0].mxu0 %v903
    %v1009 = vpop.f32.mrb[0].mxu0
    %v1010 = vadd.f32 %v925, %v1009
    %v1011 = vpop.f32.mrb[0].mxu0
    %v1012 = vpop.f32.mrb[0].mxu0
    %v1013 = vadd.f32 %v925, %v1012
    %v1014 = vpop.f32.mrb[0].mxu0
    %1015 = vdwg.mxu0
    %vm1016 = vcmp.ge.f32.partialorder %v1010, 0.0
    %vm1017 = vcmp.ge.f32.partialorder %v1013, 0.0
    %v1018 = vmul.f32 %v1010, 0.01
    %v1019 = vmul.f32 %v1013, 0.01
    %v1020 = vsel %vm1016, %v1010, %v1018
    %v1021 = vsel %vm1017, %v1013, %v1019
    %v1022 = vpack.c.bf16 %v1021, %v1020
    %v1023 = vld [vmem:[%s7] sm:$0xf]
    %v1024 = vld [vmem:[%s7 + $0x4] sm:$0xf]
    %v1025 = vld [vmem:[%s7 + $0x8] sm:$0xf]
    %v1026 = vld [vmem:[%s7 + $0xc] sm:$0xf]
    %v1027 = vld [vmem:[%s7 + $0x10] sm:$0xf]
    %v1028 = vld [vmem:[%s7 + $0x14] sm:$0xf]
    %v1029 = vld [vmem:[%s7 + $0x18] sm:$0xf]
    %v1030 = vld [vmem:[%s7 + $0x1c] sm:$0xf]
    %v1031 = vld [vmem:[%s7 + $0x20] sm:$0xf]
    %v1032 = vld [vmem:[%s7 + $0x24] sm:$0xf]
    %v1033 = vld [vmem:[%s7 + $0x28] sm:$0xf]
    %v1034 = vld [vmem:[%s7 + $0x2c] sm:$0xf]
    %v1035 = vld [vmem:[%s7 + $0x30] sm:$0xf]
    %v1036 = vld [vmem:[%s7 + $0x34] sm:$0xf]
    %v1037 = vld [vmem:[%s7 + $0x38] sm:$0xf]
    %v1038 = vld [vmem:[%s7 + $0x3c] sm:$0xf]
    %v1039 = vld [vmem:[%s8] sm:$0x1]
    %v1041 = vlaneseq
    %v1042 = vshrl.u32 %v1041, 7
    %v1043 = vsub.s32 0, %v1042
    %v1044 = vrot.slane %v1039, %v1043
    %v1062 = vunpack.c.l.b16 %v1023
    %v1063 = vunpack.c.l.b16 %v1024
    %v1064 = vunpack.c.l.b16 %v1025
    %v1065 = vunpack.c.l.b16 %v1026
    %v1066 = vunpack.c.l.b16 %v1027
    %v1067 = vunpack.c.l.b16 %v1028
    %v1068 = vunpack.c.l.b16 %v1029
    %v1069 = vunpack.c.l.b16 %v1030
    %v1070 = vunpack.c.l.b16 %v1031
    %v1071 = vunpack.c.l.b16 %v1032
    %v1072 = vunpack.c.l.b16 %v1033
    %v1073 = vunpack.c.l.b16 %v1034
    %v1074 = vunpack.c.l.b16 %v1035
    %v1075 = vunpack.c.l.b16 %v1036
    %v1076 = vunpack.c.l.b16 %v1037
    %v1077 = vunpack.c.l.b16 %v1038
    %v1078 = vpack.c.b16 %v1063, %v1062
    %v1079 = vpack.c.b16 %v1065, %v1064
    %v1080 = vpack.c.b16 %v1067, %v1066
    %v1081 = vpack.c.b16 %v1069, %v1068
    %v1082 = vpack.c.b16 %v1071, %v1070
    %v1083 = vpack.c.b16 %v1073, %v1072
    %v1084 = vpack.c.b16 %v1075, %v1074
    %v1085 = vpack.c.b16 %v1077, %v1076
    %1094 = vmatprep.subr.bf16.mxu0 0
    %1095 = vmatpush1.bf16.msra.mxu0 %v1078
    %1096 = vmatprep.subr.bf16.mxu0 0
    %1097 = vmatpush1.bf16.msra.mxu0 %v1079
    %1098 = vmatprep.subr.bf16.mxu0 0
    %1099 = vmatpush1.bf16.msra.mxu0 %v1080
    %1100 = vmatprep.subr.bf16.mxu0 0
    %1101 = vmatpush1.bf16.msra.mxu0 %v1081
    %1102 = vmatprep.subr.bf16.mxu0 0
    %1103 = vmatpush1.bf16.msra.mxu0 %v1082
    %1104 = vmatprep.subr.bf16.mxu0 0
    %1105 = vmatpush1.bf16.msra.mxu0 %v1083
    %1106 = vmatprep.subr.bf16.mxu0 0
    %1107 = vmatpush1.bf16.msra.mxu0 %v1084
    %1108 = vmatprep.subr.bf16.mxu0 0
    %1109 = vmatpush1.bf16.msra.mxu0 %v1085
    %1110 = vmatprep.subr.bf16.mxu0 0
    %1111 = vmatpush1.bf16.msra.mxu0 0
    %1112 = vmatprep.subr.bf16.mxu0 0
    %1113 = vmatpush1.bf16.msra.mxu0 0
    %1114 = vmatprep.subr.bf16.mxu0 0
    %1115 = vmatpush1.bf16.msra.mxu0 0
    %1116 = vmatprep.subr.bf16.mxu0 0
    %1117 = vmatpush1.bf16.msra.mxu0 0
    %1118 = vmatprep.subr.bf16.mxu0 0
    %1119 = vmatpush1.bf16.msra.mxu0 0
    %1120 = vmatprep.subr.bf16.mxu0 0
    %1121 = vmatpush1.bf16.msra.mxu0 0
    %1122 = vmatprep.subr.bf16.mxu0 0
    %1123 = vmatpush1.bf16.msra.mxu0 0
    %1124 = vmatprep.subr.bf16.mxu0 0
    %1125 = vmatpush1.bf16.msra.mxu0 0
    %1126 = vmatprep.mubr.bf16.mxu0 0
    %1127 = vmatmul.mubr.bf16.gmra.mrb[0].mxu0 %v1022
    %v1128 = vpop.f32.mrb[0].mxu0
    %v1129 = vadd.f32 %v1044, %v1128
    %v1130 = vpop.f32.mrb[0].mxu0
    %v1131 = vpop.f32.mrb[0].mxu0
    %v1132 = vadd.f32 %v1044, %v1131
    %v1133 = vpop.f32.mrb[0].mxu0
    %1134 = vdwg.mxu0
    %v1135 = vpack.c.bf16 %v1132, %v1129
    %v1137 = vunpack.c.l.b16 %v1135
    %v1138 = vunpack.c.h.b16 %v1135
    %v1139 = vpack.c.b16 %v1137, %v1137
    %v1140 = vpack.c.b16 %v1138, %v1138
    %1143 = vst [vmem:[%s9] sm:$0xf] %v1139
    %1144 = vst [vmem:[%s9 + $0x4] sm:$0xf] %v1140
    // Predicated region
    $region42: #{linear_2l_forward.1} parent=1 // pred_check
      _
    $region43: #{linear_2l_forward.1} parent=1 // pred_check_branch
      %1146 = sbr.rel (0) target = $region45
    $region44: #{linear_2l_forward.1} parent=1 // pred_region
      _
    $region45: #{linear_2l_forward.1} parent=1 // pred_fallthru
      _
    // Predicated region
    $region46: #{linear_2l_forward.1} parent=1 // pred_check
      _
    $region47: #{linear_2l_forward.1} parent=1 // pred_check_branch
      %1148 = sbr.rel (0) target = $region49
    $region48: #{linear_2l_forward.1} parent=1 // pred_region
      _
    $region49: #{linear_2l_forward.1} parent=1 // pred_fallthru
      _
    %1149 = vsyncpa [#allocation3], 1

</llo_original>
